<compile_context>
chip_gen: v7x
topology: tpu7x:2x2x1
jax: 0.10.0
libtpu: 0.0.40
codegen_flags: <defaults>
</compile_context>

<pallas_src>
import functools

import jax
import jax.numpy as jnp
from jax.experimental import pallas as pl
from jax.experimental.pallas import tpu as pltpu

EPS = 1e-5
LANE = 128
SUBLANE = 8


def _round_up(x, m):
    return (x + m - 1) // m * m


def _cdiv(a, b):
    return (a + b - 1) // b


def _vmem_budget_bytes():
    """Generation-aware scoped-VMEM budget (review: replace flat 48 MiB clamp)."""
    cap = 64 * 1024 * 1024
    try:
        cap = int(pltpu.get_tpu_info().vmem_capacity_bytes)
    except Exception:
        pass
    if cap <= 64 * 1024 * 1024:          # v7x-class: 64 MiB physical, leave headroom
        return min(30 * 1024 * 1024, cap // 2)
    return min(96 * 1024 * 1024, (cap * 3) // 4)   # v5e/v6e: 128 MiB physical


def _working_set_bytes(tm, Kp, Cp, Cout, n_split):
    """Rough double-buffered VMEM working set of the larger (apply) call."""
    return (2 * tm * Kp * 2                          # patches tile (bf16)
            + 2 * Kp * Cp * 2                        # weights (bf16)
            + 2 * (n_split + 1) * SUBLANE * Cp * 4   # stats + gamma/beta (f32)
            + 2 * tm * Cout * 4                      # narrow output tile (f32)
            + 4 * tm * Cp * 4)                       # f32 matmul acc / temporaries


def _vmem_limit(nbytes, budget):
    return int(min(budget, max(8 * 1024 * 1024, 2 * nbytes)))


def _conv_stats_kernel(p_ref, w_ref, stats_ref):
    """Per-M-tile conv-as-matmul (bf16 in, f32 acc); accumulates this split's
    per-channel sum (row 0) and sum-of-squares (row 1) into a resident block."""
    acc = jnp.dot(p_ref[...], w_ref[...],
                  preferred_element_type=jnp.float32)          # (tm, Cp) f32

    @pl.when(pl.program_id(1) == 0)
    def _():
        stats_ref[...] = jnp.zeros_like(stats_ref)

    # Single (2, Cp) read-modify-write instead of two 1-sublane RMWs.
    partial = jnp.concatenate(
        [jnp.sum(acc, axis=0, keepdims=True),
         jnp.sum(acc * acc, axis=0, keepdims=True)], axis=0)
    stats_ref[0:2, :] = stats_ref[0:2, :] + partial


def _bn_apply_kernel(stats_ref, gb_ref, p_ref, w_ref, out_ref, *, inv_m, n_split):
    """Combine per-split stats, fold BN into a per-channel affine, recompute the
    conv matmul for this M tile and write the narrow (tm, Cout) output."""
    ssum = stats_ref[0:1, :]
    ssq = stats_ref[1:2, :]
    for c in range(1, n_split):
        ssum = ssum + stats_ref[c * SUBLANE:c * SUBLANE + 1, :]
        ssq = ssq + stats_ref[c * SUBLANE + 1:c * SUBLANE + 2, :]
    mean = ssum * inv_m
    var = jnp.maximum(ssq * inv_m - mean * mean, 0.0)   # biased variance (training BN)
    scale = gb_ref[0:1, :] * jax.lax.rsqrt(var + EPS)   # gamma * inv_std
    shift = gb_ref[1:2, :] - mean * scale               # beta  - mean * scale

    acc = jnp.dot(p_ref[...], w_ref[...],
                  preferred_element_type=jnp.float32)   # recompute conv (cheap)
    y = acc * scale + shift
    out_ref[...] = y[:, :out_ref.shape[1]].astype(out_ref.dtype)


def curve_block_forward(x, coeffs_t, conv_weights, bn_weights, bn_biases,
                        *, stride=2, padding=1, tm=None):
    """x: (N, C_in, H, W) NCHW. conv_weights: (bends, C_out, C_in, kh, kw).
    bn_weights / bn_biases: (bends, C_out). coeffs_t: (bends,)."""
    # --- curve parameter blending (tiny glue) ---
    w_t = jnp.tensordot(coeffs_t, conv_weights, axes=1)          # (Cout, Cin, kh, kw)
    gamma_t = coeffs_t @ bn_weights                              # (Cout,)
    beta_t = coeffs_t @ bn_biases                                # (Cout,)

    N, Cin, H, W = x.shape
    Cout, _, kh, kw = w_t.shape
    Ho = (H + 2 * padding - kh) // stride + 1
    Wo = (W + 2 * padding - kw) // stride + 1
    M = N * Ho * Wo
    K = kh * kw * Cin

    # --- padded / lane-dense sizes (VMEM only; HBM output stays Cout-wide) ---
    Cp = _round_up(Cout, LANE)                     # MXU / stats lane width
    Kp = _round_up(K, LANE) if K > LANE else _round_up(K, 16)

    # --- generation-aware tile sizing ---
    budget = _vmem_budget_bytes()
    if tm is None:
        tm = 2048 if budget > 48 * 1024 * 1024 else 1024
    tm = max(SUBLANE, _round_up(min(tm, _round_up(M, SUBLANE)), SUBLANE))
    while tm > SUBLANE and _working_set_bytes(tm, Kp, Cp, Cout, 2) > budget // 2:
        tm = max(SUBLANE, _round_up(tm // 2, SUBLANE))

    n_tiles = _cdiv(M, tm)
    n_split = 2 if n_tiles >= 2 else 1             # per-core partial stats on v7x
    tiles_per_split = _cdiv(n_tiles, n_split)
    n_tiles = n_split * tiles_per_split
    Mp = n_tiles * tm

    # --- im2col in bf16, built directly in its final (M, K) layout ---
    xp = jnp.pad(x, ((0, 0), (0, 0), (padding, padding), (padding, padding)))
    xnhwc = xp.transpose(0, 2, 3, 1).astype(jnp.bfloat16)        # (N, Hp, Wp, Cin)
    slices = []
    for i in range(kh):
        for j in range(kw):
            slices.append(
                xnhwc[:, i:i + stride * Ho:stride, j:j + stride * Wo:stride, :])
    patches = jnp.stack(slices, axis=3).reshape(M, K)            # K order: (kh,kw,Cin)
    patches = jnp.pad(patches, ((0, Mp - M), (0, Kp - K)))       # zero pad M and K

    # Weights in matching (kh, kw, Cin) -> Cout layout, bf16, lane-padded (VMEM only).
    w_mat = w_t.transpose(2, 3, 1, 0).reshape(K, Cout).astype(jnp.bfloat16)
    w_mat = jnp.pad(w_mat, ((0, Kp - K), (0, Cp - Cout)))        # (Kp, Cp)

    # gamma (row 0) / beta (row 1), f32, lane-padded; padded channels stay zero.
    gb = jnp.zeros((SUBLANE, Cp), jnp.float32)
    gb = gb.at[0, :Cout].set(gamma_t.astype(jnp.float32))
    gb = gb.at[1, :Cout].set(beta_t.astype(jnp.float32))

    ws = _working_set_bytes(tm, Kp, Cp, Cout, n_split)
    vlim = _vmem_limit(ws, budget)

    # --- phase 1: conv matmul + per-split per-channel sum / sumsq partials ---
    stats = pl.pallas_call(
        _conv_stats_kernel,
        out_shape=jax.ShapeDtypeStruct((n_split * SUBLANE, Cp), jnp.float32),
        grid_spec=pltpu.PrefetchScalarGridSpec(
            num_scalar_prefetch=0,
            grid=(n_split, tiles_per_split),
            in_specs=[
                pl.BlockSpec((tm, Kp),
                             lambda c, i: (c * tiles_per_split + i, 0)),  # patches tile
                pl.BlockSpec((Kp, Cp), lambda c, i: (0, 0)),              # weights (tiny, resident)
            ],
            out_specs=pl.BlockSpec((SUBLANE, Cp), lambda c, i: (c, 0))),  # per-split stats
        compiler_params=pltpu.CompilerParams(
            dimension_semantics=("parallel", "arbitrary"),  # split across TCs; accumulate over M
            vmem_limit_bytes=vlim),
    )(patches, w_mat)

    # --- phase 2: recompute conv per tile, fold BN into per-channel affine, apply ---
    out2d = pl.pallas_call(
        functools.partial(_bn_apply_kernel, inv_m=1.0 / float(M), n_split=n_split),
        out_shape=jax.ShapeDtypeStruct((Mp, Cout), jnp.float32),  # narrow: no Cp padding in HBM
        grid_spec=pltpu.PrefetchScalarGridSpec(
            num_scalar_prefetch=0,
            grid=(n_tiles,),
            in_specs=[
                pl.BlockSpec((n_split * SUBLANE, Cp), lambda i: (0, 0)),  # stats (resident)
                pl.BlockSpec((SUBLANE, Cp), lambda i: (0, 0)),            # gamma/beta
                pl.BlockSpec((tm, Kp), lambda i: (i, 0)),                 # patches tile
                pl.BlockSpec((Kp, Cp), lambda i: (0, 0)),                 # weights
            ],
            out_specs=pl.BlockSpec((tm, Cout), lambda i: (i, 0))),        # (tm, Cout) = full last dim
        compiler_params=pltpu.CompilerParams(
            dimension_semantics=("parallel",),        # independent tiles; shards across TCs
            vmem_limit_bytes=vlim),
    )(stats, gb, patches, w_mat)

    # Slice off M padding, back to NCHW (module contract). If the consumer accepts
    # NHWC, skip the transpose and return out2d[:M].reshape(N, Ho, Wo, Cout).
    return out2d[:M].reshape(N, Ho, Wo, Cout).transpose(0, 3, 1, 2)


def reference_forward(x, coeffs_t, conv_weights, bn_weights, bn_biases,
                      *, stride=2, padding=1):
    """Pure-JAX reference (lax conv + batch-stat BN). Conv inputs are bf16-rounded to
    match the kernel's bf16-input / f32-accumulation MXU path."""
    w_t = jnp.tensordot(coeffs_t, conv_weights, axes=1)
    gamma_t = coeffs_t @ bn_weights
    beta_t = coeffs_t @ bn_biases
    x_bf = x.astype(jnp.bfloat16).astype(jnp.float32)
    w_bf = w_t.astype(jnp.bfloat16).astype(jnp.float32)
    out = jax.lax.conv_general_dilated(
        x_bf, w_bf,
        window_strides=(stride, stride),
        padding=((padding, padding), (padding, padding)),
        dimension_numbers=('NCHW', 'OIHW', 'NCHW'))
    mean = out.mean(axis=(0, 2, 3), keepdims=True)
    var = out.var(axis=(0, 2, 3), keepdims=True)    # biased, as in F.batch_norm(training)
    g = gamma_t.reshape(1, -1, 1, 1)
    b = beta_t.reshape(1, -1, 1, 1)
    return g * (out - mean) * jax.lax.rsqrt(var + EPS) + b


if __name__ == "__main__":
    key = jax.random.PRNGKey(0)
    k_x, k_w, k_g, k_b = jax.random.split(key, 4)

    # Small shapes consistent with the module.
    N, Cin, H, W = 2, 4, 16, 16
    Cout, ksz, stride, padding = 8, 4, 2, 1
    num_bends = 3  # len(fix_points) for the curve parameterization

    x = jax.random.normal(k_x, (N, Cin, H, W), dtype=jnp.float32)
    conv_weights = 0.1 * jax.random.normal(
        k_w, (num_bends, Cout, Cin, ksz, ksz), dtype=jnp.float32)
    bn_weights = 1.0 + 0.05 * jax.random.normal(
        k_g, (num_bends, Cout), dtype=jnp.float32)
    bn_biases = 0.05 * jax.random.normal(k_b, (num_bends, Cout), dtype=jnp.float32)

    # Bezier curve coefficients at t = 0.3 (as produced by curves.Bezier).
    t = 0.3
    coeffs_t = jnp.array([(1 - t) ** 2, 2 * t * (1 - t), t ** 2], dtype=jnp.float32)

    # tm=64 so the M grid has multiple tiles and the split (per-core) stats path
    # plus the cross-tile BN statistics are exercised.
    out = curve_block_forward(x, coeffs_t, conv_weights, bn_weights, bn_biases,
                              stride=stride, padding=padding, tm=64)
    out = jax.block_until_ready(out)

    ref = reference_forward(x, coeffs_t, conv_weights, bn_weights, bn_biases,
                            stride=stride, padding=padding)
    assert out.shape == (N, Cout, H // stride, W // stride), out.shape
    max_err = float(jnp.max(jnp.abs(out - ref)))
    assert max_err < 2e-3, max_err

    print("KERNEL_OK")
</pallas_src>

<mosaic_0001>
module attributes {stable_mosaic.version = 11 : i64} {
  func.func @_conv_stats_kernel(%arg0: i32, %arg1: i32, %arg2: memref<64x64xbf16, #tpu.memory_space<vmem>>, %arg3: memref<64x128xbf16, #tpu.memory_space<vmem>>, %arg4: memref<8x128xf32, #tpu.memory_space<vmem>>) attributes {dimension_semantics = [#tpu.dimension_semantics<parallel>, #tpu.dimension_semantics<arbitrary>], iteration_bounds = array<i64: 2, 1>, scalar_prefetch = 0 : i64, scratch_operands = 0 : i64, tpu.core_type = #tpu.core_type<tc>, window_params = [{transform_indices = @transform_0, window_bounds = array<i64: 64, 64>}, {pipeline_mode = #tpu.pipeline_mode<synchronous>, transform_indices = @transform_1, window_bounds = array<i64: 64, 128>}, {transform_indices = @transform_2, window_bounds = array<i64: 8, 128>}]} {
    %c0 = arith.constant 0 : index
    %c0_0 = arith.constant 0 : index
    %0 = vector.load %arg2[%c0, %c0_0] : memref<64x64xbf16, #tpu.memory_space<vmem>>, vector<64x64xbf16>
    %c0_1 = arith.constant 0 : index
    %c0_2 = arith.constant 0 : index
    %1 = vector.load %arg3[%c0_1, %c0_2] : memref<64x128xbf16, #tpu.memory_space<vmem>>, vector<64x128xbf16>
    %cst = arith.constant dense<0.000000e+00> : vector<64x128xf32>
    %2 = tpu.matmul %0, %1, %cst {dimension_numbers = #tpu.dot_dimension_numbers<[1], [0], [0], [1], [0, 0, 1, 1], [], []>} : vector<64x64xbf16>, vector<64x128xbf16>, vector<64x128xf32> -> vector<64x128xf32>
    %c0_i32 = arith.constant 0 : i32
    %3 = arith.cmpi eq, %arg1, %c0_i32 : i32
    %4 = arith.extui %3 : i1 to i32
    %c0_i32_3 = arith.constant 0 : i32
    %5 = arith.cmpi ne, %4, %c0_i32_3 : i32
    scf.if %5 {
      %cst_10 = arith.constant 0.000000e+00 : f32
      %15 = vector.broadcast %cst_10 : f32 to vector<8x128xf32>
      %c0_11 = arith.constant 0 : index
      %c0_12 = arith.constant 0 : index
      %16 = vector.load %arg4[%c0_11, %c0_12] : memref<8x128xf32, #tpu.memory_space<vmem>>, vector<8x128xf32>
      tpu.vector_store %arg4[%c0_11, %c0_12], %15 {strides = array<i32>} : memref<8x128xf32, #tpu.memory_space<vmem>>, vector<8x128xf32>,
    } else {
    }
    %cst_4 = arith.constant dense<0.000000e+00> : vector<128xf32>
    %6 = vector.multi_reduction <add>, %2, %cst_4 [0] : vector<64x128xf32> to vector<128xf32>
    %7 = vector.shape_cast %6 : vector<128xf32> to vector<1x128xf32>
    %8 = arith.mulf %2, %2 : vector<64x128xf32>
    %cst_5 = arith.constant dense<0.000000e+00> : vector<128xf32>
    %9 = vector.multi_reduction <add>, %8, %cst_5 [0] : vector<64x128xf32> to vector<128xf32>
    %10 = vector.shape_cast %9 : vector<128xf32> to vector<1x128xf32>
    %11 = tpu.concatenate %7, %10 in 0 : vector<1x128xf32>, vector<1x128xf32> -> vector<2x128xf32>
    %c0_6 = arith.constant 0 : index
    %c0_7 = arith.constant 0 : index
    %12 = vector.load %arg4[%c0_6, %c0_7] : memref<8x128xf32, #tpu.memory_space<vmem>>, vector<2x128xf32>
    %13 = arith.addf %12, %11 : vector<2x128xf32>
    %c0_8 = arith.constant 0 : index
    %c0_9 = arith.constant 0 : index
    %14 = vector.load %arg4[%c0_8, %c0_9] : memref<8x128xf32, #tpu.memory_space<vmem>>, vector<2x128xf32>
    tpu.vector_store %arg4[%c0_8, %c0_9], %13 {strides = array<i32>} : memref<8x128xf32, #tpu.memory_space<vmem>>, vector<2x128xf32>,
    return
  }
  func.func @transform_0(%arg0: i32, %arg1: i32) -> (i32, i32) {
    %c1_i32 = arith.constant 1 : i32
    %0 = arith.muli %arg0, %c1_i32 : i32
    %1 = arith.addi %0, %arg1 : i32
    %c0_i32 = arith.constant 0 : i32
    %c0_i32_0 = arith.constant 0 : i32
    return %1, %c0_i32 : i32, i32
  }
  func.func @transform_1(%arg0: i32, %arg1: i32) -> (i32, i32) {
    %c0_i32 = arith.constant 0 : i32
    %c0_i32_0 = arith.constant 0 : i32
    %c0_i32_1 = arith.constant 0 : i32
    return %c0_i32, %c0_i32_0 : i32, i32
  }
  func.func @transform_2(%arg0: i32, %arg1: i32) -> (i32, i32) {
    %c0_i32 = arith.constant 0 : i32
    %c0_i32_0 = arith.constant 0 : i32
    return %arg0, %c0_i32 : i32, i32
  }
}

</mosaic_0001>

<llo_original>
// kernel: tpu_custom_call.1
$region0: #{tpu_custom_call.1}
  #allocation0 [shape = 'u32[]', space=smem, size = 0x4, offset = 0x4, fixed_abs, tag = 'smem constant byte address 0x4 - core index']
  #allocation1 [shape = 'u32[144,128]{1,0:T(1,128)}', space=vmem, size = 0x12000, scoped, tag = 'internal scratch']
  %s0 = inlined_call_operand.vmem [shape: bf16[128,64], index: 0, kind: input, shape index: {}]
  %s1 = inlined_call_operand.vmem [shape: bf16[64,128], index: 1, kind: input, shape index: {}]
  %s2 = inlined_call_operand.hbm [shape: f32[16,128], index: 2, kind: output, shape index: {}]
  %s3 = sld [smem:[#allocation0]]
  $region45: #{tpu_custom_call.1} parent=0
    _
  %s5 = ssub.s32 1, %s3
  %s6 = scalar_select 0, %s5, %s3
  $region1: #{tpu_custom_call.1} parent=0
    #allocation2 [shape = 'u8[8192]{0}', space=vmem, size = 0x2000, scoped, tag = 'output window, operand 0']
    #allocation3 [shape = 's32[2]{0}', space=sflag, size = 0x8, scoped, tag = 'scoped memory for tpu_custom_call.1']
    %7 = vsyncpa [#allocation3], 0
    %s8 = scalar_lea.sflag [#allocation3], 1
    %9 = vsyncpa %s8, 0
    loop: start=0, step=1, limit=4
    $region2: #{tpu_custom_call.1} parent=1 // loop_pre_header
      _
    $region3: #{tpu_custom_call.1} parent=1 // loop_header
      %s11 = sphi 0, %s15
      %p12 = scmp.ge.s32.totalorder %s11, 4
      %s18 = sphi 0, %s30
      %s19 = sphi 0, %s26
      %s20 = sphi 0, %s18
      %s21 = sphi 0, %s19
      %s22 = sphi 0, %s20
      %s23 = sphi 0, %s21
      %s35 = sphi 0, %s37
      %s38 = sphi 0, %s35
      %s39 = sphi 0, %s38
      %s55 = sphi 0, %s39
      %s59 = sphi 0, %s59
      %s61 = sphi 0, %s59
      %s62 = sphi 0, %s61
      %s76 = sphi 0, %s62
      %s82 = sphi 0, %s84
      %s85 = sphi 0, %s82
      %s86 = sphi 0, %s85
      %s102 = sphi 0, %s86
    $region4: #{tpu_custom_call.1} parent=1 // loop_header_branch
      %14 = sbr.rel (%p12) target = $region8
    $region5: #{tpu_custom_call.1} parent=1 // loop_body
      %s16 = ssub.s32 %s11, 1
      %s17 = ssub.s32 %s11, 2
      %s24 = sadd.s32 1, %s19
      %p25 = scmp.ge.s32.totalorder %s24, 1
      %s26 = scalar_select %p25, 0, %s24
      %s27 = sadd.s32 1, %s18
      %s28 = scalar_select %p25, %s27, %s18
      %p29 = scmp.ge.s32.totalorder %s28, 2
      %s30 = scalar_select %p29, 0, %s28
      %s31 = sadd.s32 %s18, %s19
      %s32 = sadd.s32 %s30, %s26
      %s33 = ssub.s32 %s31, %s32
      %p34 = scmp.eq.s32.totalorder %s33, 0
      %s36 = sadd.s32 %s35, 1
      %s37 = scalar_select %p34, %s35, %s36
      %p40 = pneg %p34
      %p41 = scmp.eq.s32.totalorder %s11, 1
      %p42 = por %p40, %p41
      %p43 = scmp.ne.s32.totalorder %s35, %s38
      %p44 = scmp.eq.s32.totalorder %s11, 0
      %p45 = por %p43, %p44
      %p46 = scmp.ne.s32.totalorder %s35, %s38
      %p47 = scmp.eq.s32.totalorder %s16, 1
      %p48 = por %p46, %p47
      %p49 = scmp.ne.s32.totalorder %s38, %s39
      %p50 = scmp.eq.s32.totalorder %s16, 0
      %p51 = por %p49, %p50
      %p52 = scmp.ne.s32.totalorder %s38, %s39
      %p53 = scmp.eq.s32.totalorder %s17, 1
      %p54 = por %p52, %p53
      %p56 = scmp.ne.s32.totalorder %s39, %s55
      %p57 = scmp.eq.s32.totalorder %s17, 0
      %p58 = por %p56, %p57
      %s60 = sadd.s32 %s59, 1
      %p63 = scmp.eq.s32.totalorder %s11, 1
      %p64 = scmp.ne.s32.totalorder %s59, %s61
      %p65 = scmp.eq.s32.totalorder %s11, 0
      %p66 = por %p64, %p65
      %p67 = scmp.ne.s32.totalorder %s59, %s61
      %p68 = scmp.eq.s32.totalorder %s16, 1
      %p69 = por %p67, %p68
      %p70 = scmp.ne.s32.totalorder %s61, %s62
      %p71 = scmp.eq.s32.totalorder %s16, 0
      %p72 = por %p70, %p71
      %p73 = scmp.ne.s32.totalorder %s61, %s62
      %p74 = scmp.eq.s32.totalorder %s17, 1
      %p75 = por %p73, %p74
      %p77 = scmp.ne.s32.totalorder %s62, %s76
      %p78 = scmp.eq.s32.totalorder %s17, 0
      %p79 = por %p77, %p78
      %s80 = ssub.s32 %s18, %s30
      %p81 = scmp.eq.s32.totalorder %s80, 0
      %s83 = sadd.s32 %s82, 1
      %s84 = scalar_select %p81, %s82, %s83
      %p87 = pneg %p81
      %p88 = scmp.eq.s32.totalorder %s11, 1
      %p89 = por %p87, %p88
      %p90 = scmp.ne.s32.totalorder %s82, %s85
      %p91 = scmp.eq.s32.totalorder %s11, 0
      %p92 = por %p90, %p91
      %p93 = scmp.ne.s32.totalorder %s82, %s85
      %p94 = scmp.eq.s32.totalorder %s16, 1
      %p95 = por %p93, %p94
      %p96 = scmp.ne.s32.totalorder %s85, %s86
      %p97 = scmp.eq.s32.totalorder %s16, 0
      %p98 = por %p96, %p97
      %p99 = scmp.ne.s32.totalorder %s85, %s86
      %p100 = scmp.eq.s32.totalorder %s17, 1
      %p101 = por %p99, %p100
      %p103 = scmp.ne.s32.totalorder %s86, %s102
      %p104 = scmp.eq.s32.totalorder %s17, 0
      %p105 = por %p103, %p104
      %p106 = scmp.le.s32.totalorder 1, %s11
      %p107 = scmp.lt.s32.totalorder %s11, 3
      %p108 = pnand %p106, %p107
      %p109 = pneg %p108
      // Predicated region
      $region9: #{tpu_custom_call.1} parent=5 // pred_check
        _
      $region10: #{tpu_custom_call.1} parent=5 // pred_check_branch
        %111 = sbr.rel (%p108) target = $region12
      $region11: #{tpu_custom_call.1} parent=5 // pred_region
        %s112 = ssub.s32 %s11, 1
        // Predicated region
        $region13: #{tpu_custom_call.1} parent=11 // pred_check
          %p113 = pneg %p72
        $region14: #{tpu_custom_call.1} parent=11 // pred_check_branch
          %115 = sbr.rel (%p113) target = $region16
        $region15: #{tpu_custom_call.1} parent=11 // pred_region
          _
        $region16: #{tpu_custom_call.1} parent=11 // pred_fallthru
          _
      $region12: #{tpu_custom_call.1} parent=5 // pred_fallthru
        _
      %p116 = scmp.lt.s32.totalorder %s11, 2
      // Predicated region
      $region17: #{tpu_custom_call.1} parent=5 // pred_check
        %p117 = pneg %p116
      $region18: #{tpu_custom_call.1} parent=5 // pred_check_branch
        %119 = sbr.rel (%p117) target = $region20
      $region19: #{tpu_custom_call.1} parent=5 // pred_region
        // Predicated region
        $region21: #{tpu_custom_call.1} parent=19 // pred_check
          %p120 = pneg %p45
        $region22: #{tpu_custom_call.1} parent=19 // pred_check_branch
          %122 = sbr.rel (%p120) target = $region24
        $region23: #{tpu_custom_call.1} parent=19 // pred_region
          %s123 = sadd.s32 %s18, %s19
          %s124 = smul.u32 8, %s123
          %p125 = scmp.lt.s32.totalorder %s124, 15
          %s126 = scalar_select %p125, %s124, 15
          %s127 = smul.addr %s126, 4
          %s128 = scalar_lea.vmem %s0, %s127
          %s129 = sadd.s32 %s18, %s19
          %s130 = smul.u32 8, %s129
        $region24: #{tpu_custom_call.1} parent=19 // pred_fallthru
          _
      $region20: #{tpu_custom_call.1} parent=5 // pred_fallthru
        _
      %p131 = scmp.le.s32.totalorder 1, %s11
      %p132 = scmp.lt.s32.totalorder %s11, 3
      %p133 = pnand %p131, %p132
      %p134 = pneg %p133
      // Predicated region
      $region25: #{tpu_custom_call.1} parent=5 // pred_check
        _
      $region26: #{tpu_custom_call.1} parent=5 // pred_check_branch
        %136 = sbr.rel (%p133) target = $region28
      $region27: #{tpu_custom_call.1} parent=5 // pred_region
        %s137 = ssub.s32 %s11, 1
        %s138 = sadd.s32 %s20, %s21
        %s139 = smul.u32 8, %s138
        %p140 = scmp.lt.s32.totalorder %s139, 15
        %s141 = scalar_select %p140, %s139, 15
        %s142 = smul.addr %s141, 4
        %s143 = scalar_lea.vmem %s0, %s142
        %p144 = pneg %p51
        %p145 = pneg %p48
        %p146 = pneg %p72
        %p147 = pneg %p69
        %p148 = pneg %p98
        %p149 = pneg %p95
        %s150 = sand.u32 %s85, 1
        %s151 = scalar_lea.sflag [#allocation3], %s150
        %s152 = sand.u32 %s85, 1
        %s153 = smul.addr %s152, 8
        %s154 = scalar_lea.vmem [#allocation2], %s153
        %s155 = sadd.s32 %s20, %s21
        %s156 = smul.u32 8, %s155
        %p157 = scmp.lt.s32.totalorder %s156, 15
        %s158 = scalar_select %p157, %s156, 15
        %s159 = smul.addr %s158, 4
        %s160 = scalar_lea.vmem %s0, %s159
        %s161 = sadd.s32 %s20, %s21
        %s162 = smul.u32 8, %s161
        %v164 = vld [vmem:[%s160] sm:$0xf]
        %v165 = vld [vmem:[%s160 + $0x4] sm:$0xf]
        %v166 = vld [vmem:[%s160 + $0x8] sm:$0xf]
        %v167 = vld [vmem:[%s160 + $0xc] sm:$0xf]
        %v168 = vld [vmem:[%s160 + $0x10] sm:$0xf]
        %v169 = vld [vmem:[%s160 + $0x14] sm:$0xf]
        %v170 = vld [vmem:[%s160 + $0x18] sm:$0xf]
        %v171 = vld [vmem:[%s160 + $0x1c] sm:$0xf]
        %v172 = vld [vmem:[%s1] sm:$0xf]
        %v173 = vld [vmem:[%s1 + $0x4] sm:$0xf]
        %v174 = vld [vmem:[%s1 + $0x8] sm:$0xf]
        %v175 = vld [vmem:[%s1 + $0xc] sm:$0xf]
        %v176 = vld [vmem:[%s1 + $0x10] sm:$0xf]
        %v177 = vld [vmem:[%s1 + $0x14] sm:$0xf]
        %v178 = vld [vmem:[%s1 + $0x18] sm:$0xf]
        %v179 = vld [vmem:[%s1 + $0x1c] sm:$0xf]
        %v188 = vunpack.c.l.b16 %v164
        %v189 = vunpack.c.l.b16 %v165
        %v190 = vunpack.c.l.b16 %v166
        %v191 = vunpack.c.l.b16 %v167
        %v192 = vunpack.c.l.b16 %v168
        %v193 = vunpack.c.l.b16 %v169
        %v194 = vunpack.c.l.b16 %v170
        %v195 = vunpack.c.l.b16 %v171
        %v196 = vpack.c.b16 %v189, %v188
        %v197 = vpack.c.b16 %v191, %v190
        %v198 = vpack.c.b16 %v193, %v192
        %v199 = vpack.c.b16 %v195, %v194
        %v208 = vunpack.c.l.b16 %v172
        %v209 = vunpack.c.l.b16 %v173
        %v210 = vunpack.c.l.b16 %v174
        %v211 = vunpack.c.l.b16 %v175
        %v212 = vunpack.c.l.b16 %v176
        %v213 = vunpack.c.l.b16 %v177
        %v214 = vunpack.c.l.b16 %v178
        %v215 = vunpack.c.l.b16 %v179
        %v216 = vpack.c.b16 %v209, %v208
        %v217 = vpack.c.b16 %v211, %v210
        %v218 = vpack.c.b16 %v213, %v212
        %v219 = vpack.c.b16 %v215, %v214
        %vm224 = vcmask 523264
        %v226 = vsel %vm224, %v196, 0
        %v229 = vsel %vm224, %v197, 0
        %v232 = vsel %vm224, %v198, 0
        %v235 = vsel %vm224, %v199, 0
        %237 = vmatprep.subr.bf16.mxu0 0
        %238 = vmatpush1.bf16.msra.mxu0 %v216
        %239 = vmatprep.subr.bf16.mxu0 0
        %240 = vmatpush1.bf16.msra.mxu0 %v217
        %241 = vmatprep.subr.bf16.mxu0 0
        %242 = vmatpush1.bf16.msra.mxu0 %v218
        %243 = vmatprep.subr.bf16.mxu0 0
        %244 = vmatpush1.bf16.msra.mxu0 %v219
        %245 = vmatprep.subr.bf16.mxu0 0
        %246 = vmatpush1.bf16.msra.mxu0 0
        %247 = vmatprep.subr.bf16.mxu0 0
        %248 = vmatpush1.bf16.msra.mxu0 0
        %249 = vmatprep.subr.bf16.mxu0 0
        %250 = vmatpush1.bf16.msra.mxu0 0
        %251 = vmatprep.subr.bf16.mxu0 0
        %252 = vmatpush1.bf16.msra.mxu0 0
        %253 = vmatprep.subr.bf16.mxu0 0
        %254 = vmatpush1.bf16.msra.mxu0 0
        %255 = vmatprep.subr.bf16.mxu0 0
        %256 = vmatpush1.bf16.msra.mxu0 0
        %257 = vmatprep.subr.bf16.mxu0 0
        %258 = vmatpush1.bf16.msra.mxu0 0
        %259 = vmatprep.subr.bf16.mxu0 0
        %260 = vmatpush1.bf16.msra.mxu0 0
        %261 = vmatprep.subr.bf16.mxu0 0
        %262 = vmatpush1.bf16.msra.mxu0 0
        %263 = vmatprep.subr.bf16.mxu0 0
        %264 = vmatpush1.bf16.msra.mxu0 0
        %265 = vmatprep.subr.bf16.mxu0 0
        %266 = vmatpush1.bf16.msra.mxu0 0
        %267 = vmatprep.subr.bf16.mxu0 0
        %268 = vmatpush1.bf16.msra.mxu0 0
        %269 = vmatprep.mubr.bf16.mxu0 0
        %270 = vmatmul.mubr.bf16.gmra.mrb[0].mxu0 %v226
        %v271 = vpop.f32.mrb[0].mxu0
        %v272 = vadd.f32 0.0, %v271
        %v273 = vpop.f32.mrb[0].mxu0
        %v274 = vpop.f32.mrb[0].mxu0
        %v275 = vadd.f32 0.0, %v274
        %v276 = vpop.f32.mrb[0].mxu0
        %277 = vmatprep.mubr.bf16.mxu0 0
        %278 = vmatmul.mubr.bf16.gmra.mrb[0].mxu0 %v229
        %v279 = vpop.f32.mrb[0].mxu0
        %v280 = vadd.f32 0.0, %v279
        %v281 = vpop.f32.mrb[0].mxu0
        %v282 = vpop.f32.mrb[0].mxu0
        %v283 = vadd.f32 0.0, %v282
        %v284 = vpop.f32.mrb[0].mxu0
        %285 = vmatprep.mubr.bf16.mxu0 0
        %286 = vmatmul.mubr.bf16.gmra.mrb[0].mxu0 %v232
        %v287 = vpop.f32.mrb[0].mxu0
        %v288 = vadd.f32 0.0, %v287
        %v289 = vpop.f32.mrb[0].mxu0
        %v290 = vpop.f32.mrb[0].mxu0
        %v291 = vadd.f32 0.0, %v290
        %v292 = vpop.f32.mrb[0].mxu0
        %293 = vmatprep.mubr.bf16.mxu0 0
        %294 = vmatmul.mubr.bf16.gmra.mrb[0].mxu0 %v235
        %v295 = vpop.f32.mrb[0].mxu0
        %v296 = vadd.f32 0.0, %v295
        %v297 = vpop.f32.mrb[0].mxu0
        %v298 = vpop.f32.mrb[0].mxu0
        %v299 = vadd.f32 0.0, %v298
        %v300 = vpop.f32.mrb[0].mxu0
        %301 = vdwg.mxu0
        %p302 = scmp.eq.s32.totalorder %s21, 0
        // Predicated region
        $region29: #{tpu_custom_call.1} parent=27 // pred_check
          %p303 = pneg %p302
        $region30: #{tpu_custom_call.1} parent=27 // pred_check_branch
          %305 = sbr.rel (%p303) target = $region32
        $region31: #{tpu_custom_call.1} parent=27 // pred_region
          %306 = vst [vmem:[%s154] sm:$0xff] 0.0
        $region32: #{tpu_custom_call.1} parent=27 // pred_fallthru
          _
        %v307 = vadd.f32 %v272, %v275
        %v308 = vadd.f32 %v307, %v280
        %v309 = vadd.f32 %v308, %v283
        %v310 = vadd.f32 %v309, %v288
        %v311 = vadd.f32 %v310, %v291
        %v312 = vadd.f32 %v311, %v296
        %v313 = vadd.f32 %v312, %v299
        %v314 = vrot.slane %v313, 4
        %v315 = vadd.f32 %v313, %v314
        %v316 = vrot.slane %v315, 2
        %v317 = vadd.f32 %v315, %v316
        %v318 = vrot.slane %v317, 1
        %v319 = vadd.f32 %v317, %v318
        %v320 = vmul.f32 %v272, %v272
        %v321 = vmul.f32 %v275, %v275
        %v322 = vmul.f32 %v280, %v280
        %v323 = vmul.f32 %v283, %v283
        %v324 = vmul.f32 %v288, %v288
        %v325 = vmul.f32 %v291, %v291
        %v326 = vmul.f32 %v296, %v296
        %v327 = vmul.f32 %v299, %v299
        %v328 = vadd.f32 %v320, %v321
        %v329 = vadd.f32 %v328, %v322
        %v330 = vadd.f32 %v329, %v323
        %v331 = vadd.f32 %v330, %v324
        %v332 = vadd.f32 %v331, %v325
        %v333 = vadd.f32 %v332, %v326
        %v334 = vadd.f32 %v333, %v327
        %v335 = vrot.slane %v334, 4
        %v336 = vadd.f32 %v334, %v335
        %v337 = vrot.slane %v336, 2
        %v338 = vadd.f32 %v336, %v337
        %v339 = vrot.slane %v338, 1
        %v340 = vadd.f32 %v338, %v339
        %vm341 = vcmask 1040384
        %v342 = vsel %vm341, %v319, %v340
        %v343 = vld [vmem:[%s154] sm:$0x3]
        %v344 = vadd.f32 %v343, %v342
        %345 = vst [vmem:[%s154] sm:$0x3] %v344
        %s346 = sand.u32 %s85, 1
        %s347 = scalar_lea.sflag [#allocation3], %s346
        %s348 = sand.u32 %s85, 1
        %s349 = smul.addr %s348, 8
        %s350 = scalar_lea.vmem [#allocation2], %s349
        // Predicated region
        $region33: #{tpu_custom_call.1} parent=27 // pred_check
          %p351 = pneg %p95
        $region34: #{tpu_custom_call.1} parent=27 // pred_check_branch
          %353 = sbr.rel (%p351) target = $region36
        $region35: #{tpu_custom_call.1} parent=27 // pred_region
          %s355 = ssub.s32 128, 128
          %356 = vsyncadd %s347, %s355
          %s357 = smul.addr %s20, 128
          %s358 = scalar_lea.hbm %s2, %s357
          %s360 = sshll.u32 %s350, 4
          %s361 = int_to_ptr.vmem [resolvable:$true] %s360
          %363 = dma.vmem_to_hbm [thread:$0]  %s361, 128, %s358, %s347
        $region36: #{tpu_custom_call.1} parent=27 // pred_fallthru
          _
      $region28: #{tpu_custom_call.1} parent=5 // pred_fallthru
        _
      %p364 = scmp.le.s32.totalorder 2, %s11
      // Predicated region
      $region37: #{tpu_custom_call.1} parent=5 // pred_check
        %p365 = pneg %p364
      $region38: #{tpu_custom_call.1} parent=5 // pred_check_branch
        %367 = sbr.rel (%p365) target = $region40
      $region39: #{tpu_custom_call.1} parent=5 // pred_region
        %s368 = ssub.s32 %s11, 2
        // Predicated region
        $region41: #{tpu_custom_call.1} parent=39 // pred_check
          %p369 = pneg %p101
        $region42: #{tpu_custom_call.1} parent=39 // pred_check_branch
          %371 = sbr.rel (%p369) target = $region44
        $region43: #{tpu_custom_call.1} parent=39 // pred_region
          %s372 = sand.u32 %s86, 1
          %s373 = scalar_lea.sflag [#allocation3], %s372
          %s374 = sand.u32 %s86, 1
          %s375 = smul.addr %s374, 8
          %s376 = scalar_lea.vmem [#allocation2], %s375
          %377 = dma.done %s373, 128
        $region44: #{tpu_custom_call.1} parent=39 // pred_fallthru
          _
      $region40: #{tpu_custom_call.1} parent=5 // pred_fallthru
        _
    $region6: #{tpu_custom_call.1} parent=1 // loop_footer
      %s15 = sadd.s32 1, %s11
    $region7: #{tpu_custom_call.1} parent=1 // loop_footer_branch
      %10 = sbr.rel target = $region3
    $region8: #{tpu_custom_call.1} parent=1 // loop_exit
      _
    %378 = vsyncpa [#allocation3], 1
    %s379 = scalar_lea.sflag [#allocation3], 1
    %380 = vsyncpa %s379, 1

</llo_original>
